<compile_context>
chip_gen: v7x
topology: tpu7x:2x2x1
jax: 0.10.0
libtpu: 0.0.40
codegen_flags: <defaults>
</compile_context>

<pallas_src>
import functools

import jax
import jax.numpy as jnp
from jax.experimental import pallas as pl
from jax.experimental.pallas import tpu as pltpu

LANES = 128     # vreg lane width (batch axis)
SUBLANES = 8    # vreg sublane count (row-tile alignment)

# Flat parameter layout in SMEM (46 f32 scalars):
#   [ 0: 5)  w1     Linear(1,5).weight reshaped to (5,)
#   [ 5:10)  b1
#   [10:35)  w2_io  Linear(5,5).weight transposed to (in,out), row-major j*5+k
#   [35:40)  b2
#   [40:45)  w3     Linear(5,1).weight reshaped to (5,)
#   [45:46)  b3
_W1, _B1, _W2, _B2, _W3, _B3 = 0, 5, 10, 35, 40, 45


def mlp_kernel(p_ref, x_ref, o_ref):
    """Every element of the (tile_rows, 128) block is one independent scalar
    input to the MLP. All weights are scalar reads from SMEM; everything else
    is elementwise VPU work on full-width vregs."""
    x = x_ref[...]                                          # (tr, 128) f32

    # Layer 1: Linear(1,5) + ReLU -> five lane-dense feature planes.
    h1 = [jnp.maximum(x * p_ref[_W1 + j] + p_ref[_B1 + j], 0.0)
          for j in range(5)]

    # Layer 2: Linear(5,5) + ReLU as 25 unrolled FMAs (no MXU). Bias folded
    # into the first FMA of each accumulator chain (saves VALU adds).
    h2 = []
    for k in range(5):
        acc = h1[0] * p_ref[_W2 + 0 * 5 + k] + p_ref[_B2 + k]
        for j in range(1, 5):
            acc = acc + h1[j] * p_ref[_W2 + j * 5 + k]
        h2.append(jnp.maximum(acc, 0.0))

    # Layer 3: Linear(5,1) as 5 FMAs (no cross-lane reduce), bias folded in.
    out = h2[0] * p_ref[_W3 + 0] + p_ref[_B3]
    for k in range(1, 5):
        out = out + h2[k] * p_ref[_W3 + k]
    o_ref[...] = out


def _round_up(x, m):
    return -(-x // m) * m


def _cdiv(a, b):
    return -(-a // b)


@functools.partial(jax.jit, static_argnames=("block_rows",))
def lajimodel_forward(lens, params, *, block_rows=2048):
    """lens: any-shape array of lengths (int or float). Returns (N, 1) f32."""
    w1, b1, w2, b2, w3, b3 = params

    # Glue (matches torch: np.asarray(..., dtype=float).reshape(-1, 1)).
    x = jnp.asarray(lens, dtype=jnp.float32).reshape(-1)
    n = x.shape[0]

    # Lane-dense layout: pad N only up to a whole number of (8,128) vregs.
    rows = _round_up(max(_cdiv(n, LANES), 1), SUBLANES)

    # Tile rows: big tiles amortize per-step pipeline overhead; whenever there
    # is more than one vreg-row of work, guarantee >= 2 grid steps so the
    # "parallel" axis can shard across v7x's two TensorCores.
    if rows <= SUBLANES:
        tr = rows
    else:
        tr = min(_round_up(block_rows, SUBLANES),
                 _round_up(_cdiv(rows, 2), SUBLANES))
    grid = _cdiv(rows, tr)   # ragged last block: OOB stores are masked

    x2d = jnp.pad(x, (0, rows * LANES - n)).reshape(rows, LANES)

    # Pack the 46 weight/bias scalars into one flat f32 SMEM array.
    p_flat = jnp.concatenate([
        jnp.asarray(w1, jnp.float32).reshape(5),        # (5,1) -> (5,)
        jnp.asarray(b1, jnp.float32).reshape(5),
        jnp.asarray(w2, jnp.float32).T.reshape(25),     # (out,in) -> (in,out)
        jnp.asarray(b2, jnp.float32).reshape(5),
        jnp.asarray(w3, jnp.float32).reshape(5),        # (1,5) -> (5,)
        jnp.asarray(b3, jnp.float32).reshape(1),
    ])

    out2d = pl.pallas_call(
        mlp_kernel,
        out_shape=jax.ShapeDtypeStruct((rows, LANES), jnp.float32),
        grid_spec=pltpu.PrefetchScalarGridSpec(
            num_scalar_prefetch=0,
            grid=(grid,),
            in_specs=[
                pl.BlockSpec(memory_space=pltpu.MemorySpace.SMEM),  # params
                pl.BlockSpec((tr, LANES), lambda i: (i, 0)),        # x tile
            ],
            out_specs=pl.BlockSpec((tr, LANES), lambda i: (i, 0)),
        ),
        compiler_params=pltpu.CompilerParams(
            dimension_semantics=("parallel",),
            vmem_limit_bytes=32 << 20,   # headroom for 2048-row tiles on v5e
        ),
    )(p_flat, x2d)

    # Drop padded elements (zero-padded inputs yield relu(b1)-derived values).
    return out2d.reshape(-1)[:n].reshape(n, 1)


def init_params(key):
    """Deterministic synthetic init matching nn.Linear shapes (out, in)."""
    ks = jax.random.split(key, 6)
    w1 = jax.random.normal(ks[0], (5, 1), jnp.float32) * 0.5   # Linear(1,5).weight
    b1 = jax.random.normal(ks[1], (5,), jnp.float32) * 0.1
    w2 = jax.random.normal(ks[2], (5, 5), jnp.float32) * 0.5   # Linear(5,5).weight
    b2 = jax.random.normal(ks[3], (5,), jnp.float32) * 0.1
    w3 = jax.random.normal(ks[4], (1, 5), jnp.float32) * 0.5   # Linear(5,1).weight
    b3 = jax.random.normal(ks[5], (1,), jnp.float32) * 0.1
    return (w1, b1, w2, b2, w3, b3)


def reference_forward(lens, params):
    w1, b1, w2, b2, w3, b3 = params
    x = jnp.asarray(lens, dtype=jnp.float32).reshape(-1, 1)
    h1 = jax.nn.relu(x @ w1.T + b1)
    h2 = jax.nn.relu(h1 @ w2.T + b2)
    return h2 @ w3.T + b3


if __name__ == "__main__":
    key = jax.random.PRNGKey(0)
    k_lens, k_params = jax.random.split(key)

    # 'lens' is a batch of sequence lengths (ints), batch = 8.
    lens = jax.random.randint(k_lens, (8,), 1, 20)
    params = init_params(k_params)

    out = lajimodel_forward(lens, params)
    out = jax.block_until_ready(out)

    ref = reference_forward(lens, params)
    assert out.shape == (8, 1), out.shape
    assert jnp.allclose(out, ref, atol=1e-5, rtol=1e-5), (out, ref)

    # Also exercise a multi-tile / ragged-last-block path (>= 2 grid steps).
    lens_big = jax.random.randint(k_lens, (3000,), 1, 200)
    out_big = jax.block_until_ready(lajimodel_forward(lens_big, params))
    ref_big = reference_forward(lens_big, params)
    assert out_big.shape == (3000, 1), out_big.shape
    assert jnp.allclose(out_big, ref_big, atol=1e-5, rtol=1e-5)

    print("KERNEL_OK")
</pallas_src>

<mosaic_0001>
module attributes {stable_mosaic.version = 11 : i64} {
  func.func @mlp_kernel(%arg0: i32, %arg1: memref<46xf32, #tpu.memory_space<smem>>, %arg2: memref<8x128xf32, #tpu.memory_space<vmem>>, %arg3: memref<8x128xf32, #tpu.memory_space<vmem>>) attributes {dimension_semantics = [#tpu.dimension_semantics<parallel>], iteration_bounds = array<i64: 1>, scalar_prefetch = 0 : i64, scratch_operands = 0 : i64, tpu.core_type = #tpu.core_type<tc>, window_params = [{transform_indices = @transform_0, window_bounds = array<i64: 46>}, {transform_indices = @transform_1, window_bounds = array<i64: 8, 128>}, {transform_indices = @transform_2, window_bounds = array<i64: 8, 128>}]} {
    %c0 = arith.constant 0 : index
    %c0_0 = arith.constant 0 : index
    %0 = vector.load %arg2[%c0, %c0_0] : memref<8x128xf32, #tpu.memory_space<vmem>>, vector<8x128xf32>
    %c0_1 = arith.constant 0 : index
    %1 = memref.load %arg1[%c0_1] : memref<46xf32, #tpu.memory_space<smem>>
    %2 = vector.broadcast %1 : f32 to vector<8x128xf32>
    %3 = arith.mulf %0, %2 : vector<8x128xf32>
    %c5 = arith.constant 5 : index
    %4 = memref.load %arg1[%c5] : memref<46xf32, #tpu.memory_space<smem>>
    %5 = vector.broadcast %4 : f32 to vector<8x128xf32>
    %6 = arith.addf %3, %5 : vector<8x128xf32>
    %cst = arith.constant 0.000000e+00 : f32
    %7 = vector.broadcast %cst : f32 to vector<8x128xf32>
    %8 = arith.maximumf %6, %7 : vector<8x128xf32>
    %c1 = arith.constant 1 : index
    %9 = memref.load %arg1[%c1] : memref<46xf32, #tpu.memory_space<smem>>
    %10 = vector.broadcast %9 : f32 to vector<8x128xf32>
    %11 = arith.mulf %0, %10 : vector<8x128xf32>
    %c6 = arith.constant 6 : index
    %12 = memref.load %arg1[%c6] : memref<46xf32, #tpu.memory_space<smem>>
    %13 = vector.broadcast %12 : f32 to vector<8x128xf32>
    %14 = arith.addf %11, %13 : vector<8x128xf32>
    %cst_2 = arith.constant 0.000000e+00 : f32
    %15 = vector.broadcast %cst_2 : f32 to vector<8x128xf32>
    %16 = arith.maximumf %14, %15 : vector<8x128xf32>
    %c2 = arith.constant 2 : index
    %17 = memref.load %arg1[%c2] : memref<46xf32, #tpu.memory_space<smem>>
    %18 = vector.broadcast %17 : f32 to vector<8x128xf32>
    %19 = arith.mulf %0, %18 : vector<8x128xf32>
    %c7 = arith.constant 7 : index
    %20 = memref.load %arg1[%c7] : memref<46xf32, #tpu.memory_space<smem>>
    %21 = vector.broadcast %20 : f32 to vector<8x128xf32>
    %22 = arith.addf %19, %21 : vector<8x128xf32>
    %cst_3 = arith.constant 0.000000e+00 : f32
    %23 = vector.broadcast %cst_3 : f32 to vector<8x128xf32>
    %24 = arith.maximumf %22, %23 : vector<8x128xf32>
    %c3 = arith.constant 3 : index
    %25 = memref.load %arg1[%c3] : memref<46xf32, #tpu.memory_space<smem>>
    %26 = vector.broadcast %25 : f32 to vector<8x128xf32>
    %27 = arith.mulf %0, %26 : vector<8x128xf32>
    %c8 = arith.constant 8 : index
    %28 = memref.load %arg1[%c8] : memref<46xf32, #tpu.memory_space<smem>>
    %29 = vector.broadcast %28 : f32 to vector<8x128xf32>
    %30 = arith.addf %27, %29 : vector<8x128xf32>
    %cst_4 = arith.constant 0.000000e+00 : f32
    %31 = vector.broadcast %cst_4 : f32 to vector<8x128xf32>
    %32 = arith.maximumf %30, %31 : vector<8x128xf32>
    %c4 = arith.constant 4 : index
    %33 = memref.load %arg1[%c4] : memref<46xf32, #tpu.memory_space<smem>>
    %34 = vector.broadcast %33 : f32 to vector<8x128xf32>
    %35 = arith.mulf %0, %34 : vector<8x128xf32>
    %c9 = arith.constant 9 : index
    %36 = memref.load %arg1[%c9] : memref<46xf32, #tpu.memory_space<smem>>
    %37 = vector.broadcast %36 : f32 to vector<8x128xf32>
    %38 = arith.addf %35, %37 : vector<8x128xf32>
    %cst_5 = arith.constant 0.000000e+00 : f32
    %39 = vector.broadcast %cst_5 : f32 to vector<8x128xf32>
    %40 = arith.maximumf %38, %39 : vector<8x128xf32>
    %c10 = arith.constant 10 : index
    %41 = memref.load %arg1[%c10] : memref<46xf32, #tpu.memory_space<smem>>
    %42 = vector.broadcast %41 : f32 to vector<8x128xf32>
    %43 = arith.mulf %8, %42 : vector<8x128xf32>
    %c35 = arith.constant 35 : index
    %44 = memref.load %arg1[%c35] : memref<46xf32, #tpu.memory_space<smem>>
    %45 = vector.broadcast %44 : f32 to vector<8x128xf32>
    %46 = arith.addf %43, %45 : vector<8x128xf32>
    %c15 = arith.constant 15 : index
    %47 = memref.load %arg1[%c15] : memref<46xf32, #tpu.memory_space<smem>>
    %48 = vector.broadcast %47 : f32 to vector<8x128xf32>
    %49 = arith.mulf %16, %48 : vector<8x128xf32>
    %50 = arith.addf %46, %49 : vector<8x128xf32>
    %c20 = arith.constant 20 : index
    %51 = memref.load %arg1[%c20] : memref<46xf32, #tpu.memory_space<smem>>
    %52 = vector.broadcast %51 : f32 to vector<8x128xf32>
    %53 = arith.mulf %24, %52 : vector<8x128xf32>
    %54 = arith.addf %50, %53 : vector<8x128xf32>
    %c25 = arith.constant 25 : index
    %55 = memref.load %arg1[%c25] : memref<46xf32, #tpu.memory_space<smem>>
    %56 = vector.broadcast %55 : f32 to vector<8x128xf32>
    %57 = arith.mulf %32, %56 : vector<8x128xf32>
    %58 = arith.addf %54, %57 : vector<8x128xf32>
    %c30 = arith.constant 30 : index
    %59 = memref.load %arg1[%c30] : memref<46xf32, #tpu.memory_space<smem>>
    %60 = vector.broadcast %59 : f32 to vector<8x128xf32>
    %61 = arith.mulf %40, %60 : vector<8x128xf32>
    %62 = arith.addf %58, %61 : vector<8x128xf32>
    %cst_6 = arith.constant 0.000000e+00 : f32
    %63 = vector.broadcast %cst_6 : f32 to vector<8x128xf32>
    %64 = arith.maximumf %62, %63 : vector<8x128xf32>
    %c11 = arith.constant 11 : index
    %65 = memref.load %arg1[%c11] : memref<46xf32, #tpu.memory_space<smem>>
    %66 = vector.broadcast %65 : f32 to vector<8x128xf32>
    %67 = arith.mulf %8, %66 : vector<8x128xf32>
    %c36 = arith.constant 36 : index
    %68 = memref.load %arg1[%c36] : memref<46xf32, #tpu.memory_space<smem>>
    %69 = vector.broadcast %68 : f32 to vector<8x128xf32>
    %70 = arith.addf %67, %69 : vector<8x128xf32>
    %c16 = arith.constant 16 : index
    %71 = memref.load %arg1[%c16] : memref<46xf32, #tpu.memory_space<smem>>
    %72 = vector.broadcast %71 : f32 to vector<8x128xf32>
    %73 = arith.mulf %16, %72 : vector<8x128xf32>
    %74 = arith.addf %70, %73 : vector<8x128xf32>
    %c21 = arith.constant 21 : index
    %75 = memref.load %arg1[%c21] : memref<46xf32, #tpu.memory_space<smem>>
    %76 = vector.broadcast %75 : f32 to vector<8x128xf32>
    %77 = arith.mulf %24, %76 : vector<8x128xf32>
    %78 = arith.addf %74, %77 : vector<8x128xf32>
    %c26 = arith.constant 26 : index
    %79 = memref.load %arg1[%c26] : memref<46xf32, #tpu.memory_space<smem>>
    %80 = vector.broadcast %79 : f32 to vector<8x128xf32>
    %81 = arith.mulf %32, %80 : vector<8x128xf32>
    %82 = arith.addf %78, %81 : vector<8x128xf32>
    %c31 = arith.constant 31 : index
    %83 = memref.load %arg1[%c31] : memref<46xf32, #tpu.memory_space<smem>>
    %84 = vector.broadcast %83 : f32 to vector<8x128xf32>
    %85 = arith.mulf %40, %84 : vector<8x128xf32>
    %86 = arith.addf %82, %85 : vector<8x128xf32>
    %cst_7 = arith.constant 0.000000e+00 : f32
    %87 = vector.broadcast %cst_7 : f32 to vector<8x128xf32>
    %88 = arith.maximumf %86, %87 : vector<8x128xf32>
    %c12 = arith.constant 12 : index
    %89 = memref.load %arg1[%c12] : memref<46xf32, #tpu.memory_space<smem>>
    %90 = vector.broadcast %89 : f32 to vector<8x128xf32>
    %91 = arith.mulf %8, %90 : vector<8x128xf32>
    %c37 = arith.constant 37 : index
    %92 = memref.load %arg1[%c37] : memref<46xf32, #tpu.memory_space<smem>>
    %93 = vector.broadcast %92 : f32 to vector<8x128xf32>
    %94 = arith.addf %91, %93 : vector<8x128xf32>
    %c17 = arith.constant 17 : index
    %95 = memref.load %arg1[%c17] : memref<46xf32, #tpu.memory_space<smem>>
    %96 = vector.broadcast %95 : f32 to vector<8x128xf32>
    %97 = arith.mulf %16, %96 : vector<8x128xf32>
    %98 = arith.addf %94, %97 : vector<8x128xf32>
    %c22 = arith.constant 22 : index
    %99 = memref.load %arg1[%c22] : memref<46xf32, #tpu.memory_space<smem>>
    %100 = vector.broadcast %99 : f32 to vector<8x128xf32>
    %101 = arith.mulf %24, %100 : vector<8x128xf32>
    %102 = arith.addf %98, %101 : vector<8x128xf32>
    %c27 = arith.constant 27 : index
    %103 = memref.load %arg1[%c27] : memref<46xf32, #tpu.memory_space<smem>>
    %104 = vector.broadcast %103 : f32 to vector<8x128xf32>
    %105 = arith.mulf %32, %104 : vector<8x128xf32>
    %106 = arith.addf %102, %105 : vector<8x128xf32>
    %c32 = arith.constant 32 : index
    %107 = memref.load %arg1[%c32] : memref<46xf32, #tpu.memory_space<smem>>
    %108 = vector.broadcast %107 : f32 to vector<8x128xf32>
    %109 = arith.mulf %40, %108 : vector<8x128xf32>
    %110 = arith.addf %106, %109 : vector<8x128xf32>
    %cst_8 = arith.constant 0.000000e+00 : f32
    %111 = vector.broadcast %cst_8 : f32 to vector<8x128xf32>
    %112 = arith.maximumf %110, %111 : vector<8x128xf32>
    %c13 = arith.constant 13 : index
    %113 = memref.load %arg1[%c13] : memref<46xf32, #tpu.memory_space<smem>>
    %114 = vector.broadcast %113 : f32 to vector<8x128xf32>
    %115 = arith.mulf %8, %114 : vector<8x128xf32>
    %c38 = arith.constant 38 : index
    %116 = memref.load %arg1[%c38] : memref<46xf32, #tpu.memory_space<smem>>
    %117 = vector.broadcast %116 : f32 to vector<8x128xf32>
    %118 = arith.addf %115, %117 : vector<8x128xf32>
    %c18 = arith.constant 18 : index
    %119 = memref.load %arg1[%c18] : memref<46xf32, #tpu.memory_space<smem>>
    %120 = vector.broadcast %119 : f32 to vector<8x128xf32>
    %121 = arith.mulf %16, %120 : vector<8x128xf32>
    %122 = arith.addf %118, %121 : vector<8x128xf32>
    %c23 = arith.constant 23 : index
    %123 = memref.load %arg1[%c23] : memref<46xf32, #tpu.memory_space<smem>>
    %124 = vector.broadcast %123 : f32 to vector<8x128xf32>
    %125 = arith.mulf %24, %124 : vector<8x128xf32>
    %126 = arith.addf %122, %125 : vector<8x128xf32>
    %c28 = arith.constant 28 : index
    %127 = memref.load %arg1[%c28] : memref<46xf32, #tpu.memory_space<smem>>
    %128 = vector.broadcast %127 : f32 to vector<8x128xf32>
    %129 = arith.mulf %32, %128 : vector<8x128xf32>
    %130 = arith.addf %126, %129 : vector<8x128xf32>
    %c33 = arith.constant 33 : index
    %131 = memref.load %arg1[%c33] : memref<46xf32, #tpu.memory_space<smem>>
    %132 = vector.broadcast %131 : f32 to vector<8x128xf32>
    %133 = arith.mulf %40, %132 : vector<8x128xf32>
    %134 = arith.addf %130, %133 : vector<8x128xf32>
    %cst_9 = arith.constant 0.000000e+00 : f32
    %135 = vector.broadcast %cst_9 : f32 to vector<8x128xf32>
    %136 = arith.maximumf %134, %135 : vector<8x128xf32>
    %c14 = arith.constant 14 : index
    %137 = memref.load %arg1[%c14] : memref<46xf32, #tpu.memory_space<smem>>
    %138 = vector.broadcast %137 : f32 to vector<8x128xf32>
    %139 = arith.mulf %8, %138 : vector<8x128xf32>
    %c39 = arith.constant 39 : index
    %140 = memref.load %arg1[%c39] : memref<46xf32, #tpu.memory_space<smem>>
    %141 = vector.broadcast %140 : f32 to vector<8x128xf32>
    %142 = arith.addf %139, %141 : vector<8x128xf32>
    %c19 = arith.constant 19 : index
    %143 = memref.load %arg1[%c19] : memref<46xf32, #tpu.memory_space<smem>>
    %144 = vector.broadcast %143 : f32 to vector<8x128xf32>
    %145 = arith.mulf %16, %144 : vector<8x128xf32>
    %146 = arith.addf %142, %145 : vector<8x128xf32>
    %c24 = arith.constant 24 : index
    %147 = memref.load %arg1[%c24] : memref<46xf32, #tpu.memory_space<smem>>
    %148 = vector.broadcast %147 : f32 to vector<8x128xf32>
    %149 = arith.mulf %24, %148 : vector<8x128xf32>
    %150 = arith.addf %146, %149 : vector<8x128xf32>
    %c29 = arith.constant 29 : index
    %151 = memref.load %arg1[%c29] : memref<46xf32, #tpu.memory_space<smem>>
    %152 = vector.broadcast %151 : f32 to vector<8x128xf32>
    %153 = arith.mulf %32, %152 : vector<8x128xf32>
    %154 = arith.addf %150, %153 : vector<8x128xf32>
    %c34 = arith.constant 34 : index
    %155 = memref.load %arg1[%c34] : memref<46xf32, #tpu.memory_space<smem>>
    %156 = vector.broadcast %155 : f32 to vector<8x128xf32>
    %157 = arith.mulf %40, %156 : vector<8x128xf32>
    %158 = arith.addf %154, %157 : vector<8x128xf32>
    %cst_10 = arith.constant 0.000000e+00 : f32
    %159 = vector.broadcast %cst_10 : f32 to vector<8x128xf32>
    %160 = arith.maximumf %158, %159 : vector<8x128xf32>
    %c40 = arith.constant 40 : index
    %161 = memref.load %arg1[%c40] : memref<46xf32, #tpu.memory_space<smem>>
    %162 = vector.broadcast %161 : f32 to vector<8x128xf32>
    %163 = arith.mulf %64, %162 : vector<8x128xf32>
    %c45 = arith.constant 45 : index
    %164 = memref.load %arg1[%c45] : memref<46xf32, #tpu.memory_space<smem>>
    %165 = vector.broadcast %164 : f32 to vector<8x128xf32>
    %166 = arith.addf %163, %165 : vector<8x128xf32>
    %c41 = arith.constant 41 : index
    %167 = memref.load %arg1[%c41] : memref<46xf32, #tpu.memory_space<smem>>
    %168 = vector.broadcast %167 : f32 to vector<8x128xf32>
    %169 = arith.mulf %88, %168 : vector<8x128xf32>
    %170 = arith.addf %166, %169 : vector<8x128xf32>
    %c42 = arith.constant 42 : index
    %171 = memref.load %arg1[%c42] : memref<46xf32, #tpu.memory_space<smem>>
    %172 = vector.broadcast %171 : f32 to vector<8x128xf32>
    %173 = arith.mulf %112, %172 : vector<8x128xf32>
    %174 = arith.addf %170, %173 : vector<8x128xf32>
    %c43 = arith.constant 43 : index
    %175 = memref.load %arg1[%c43] : memref<46xf32, #tpu.memory_space<smem>>
    %176 = vector.broadcast %175 : f32 to vector<8x128xf32>
    %177 = arith.mulf %136, %176 : vector<8x128xf32>
    %178 = arith.addf %174, %177 : vector<8x128xf32>
    %c44 = arith.constant 44 : index
    %179 = memref.load %arg1[%c44] : memref<46xf32, #tpu.memory_space<smem>>
    %180 = vector.broadcast %179 : f32 to vector<8x128xf32>
    %181 = arith.mulf %160, %180 : vector<8x128xf32>
    %182 = arith.addf %178, %181 : vector<8x128xf32>
    %c0_11 = arith.constant 0 : index
    %c0_12 = arith.constant 0 : index
    %183 = vector.load %arg3[%c0_11, %c0_12] : memref<8x128xf32, #tpu.memory_space<vmem>>, vector<8x128xf32>
    tpu.vector_store %arg3[%c0_11, %c0_12], %182 {strides = array<i32>} : memref<8x128xf32, #tpu.memory_space<vmem>>, vector<8x128xf32>,
    return
  }
  func.func @transform_0(%arg0: i32) -> i32 {
    %c0_i32 = arith.constant 0 : i32
    %c0_i32_0 = arith.constant 0 : i32
    return %c0_i32 : i32
  }
  func.func @transform_1(%arg0: i32) -> (i32, i32) {
    %c0_i32 = arith.constant 0 : i32
    %c0_i32_0 = arith.constant 0 : i32
    return %arg0, %c0_i32 : i32, i32
  }
  func.func @transform_2(%arg0: i32) -> (i32, i32) {
    %c0_i32 = arith.constant 0 : i32
    %c0_i32_0 = arith.constant 0 : i32
    return %arg0, %c0_i32 : i32, i32
  }
}

</mosaic_0001>

<llo_original>
// kernel: lajimodel_forward.1
$region0: #{lajimodel_forward.1}
  #allocation0 [shape = 'u32[]', space=smem, size = 0x4, offset = 0x4, fixed_abs, tag = 'smem constant byte address 0x4 - core index']
  #allocation1 [shape = 'u32[144,128]{1,0:T(1,128)}', space=vmem, size = 0x12000, scoped, tag = 'internal scratch']
  %s0 = inlined_call_operand.vmem [shape: f32[46], index: 0, kind: input, shape index: {}]
  %s1 = inlined_call_operand.vmem [shape: f32[8,128], index: 1, kind: input, shape index: {}]
  %s2 = inlined_call_operand.vmem [shape: f32[8,128], index: 2, kind: output, shape index: {}]
  %s3 = sld [smem:[#allocation0]]
  $region22: #{lajimodel_forward.1} parent=0
    _
  %s5 = ssub.s32 1, %s3
  %s6 = scalar_select 0, %s5, %s3
  $region1: #{lajimodel_forward.1} parent=0
    #allocation2 [shape = 'u8[512]{0}', space=smem, size = 0x200, scoped, tag = 'input window, operand 0, single buffered']
    #allocation3 [shape = 's32[1]{0}', space=sflag, size = 0x4, scoped, tag = 'scoped memory for lajimodel_forward.1']
    %7 = vsyncpa [#allocation3], 0
    // Predicated region
    $region2: #{lajimodel_forward.1} parent=1 // pred_check
      _
    $region3: #{lajimodel_forward.1} parent=1 // pred_check_branch
      %9 = sbr.rel (0) target = $region5
    $region4: #{lajimodel_forward.1} parent=1 // pred_region
      %s11 = ssub.s32 16, 16
      %12 = vsyncadd [#allocation3], %s11
      %s14 = sshll.u32 %s0, 4
      %s15 = int_to_ptr.vmem [resolvable:$true] %s14
      %17 = dma.vmem_to_smem %s15, 16, [#allocation2], [#allocation3]
    $region5: #{lajimodel_forward.1} parent=1 // pred_fallthru
      _
    // Predicated region
    $region6: #{lajimodel_forward.1} parent=1 // pred_check
      _
    $region7: #{lajimodel_forward.1} parent=1 // pred_check_branch
      %19 = sbr.rel (0) target = $region9
    $region8: #{lajimodel_forward.1} parent=1 // pred_region
      _
    $region9: #{lajimodel_forward.1} parent=1 // pred_fallthru
      _
    // Predicated region
    $region10: #{lajimodel_forward.1} parent=1 // pred_check
      _
    $region11: #{lajimodel_forward.1} parent=1 // pred_check_branch
      %21 = sbr.rel (0) target = $region13
    $region12: #{lajimodel_forward.1} parent=1 // pred_region
      %22 = dma.done [#allocation3], 16
    $region13: #{lajimodel_forward.1} parent=1 // pred_fallthru
      _
    %23 = sfence
    %v24 = vld [vmem:[%s1] sm:$0xff]
    %s25 = sld [smem:[#allocation2]]
    %v26 = vstv %s25
    %v27 = vmul.f32 %v24, %v26
    %s28 = sld [smem:[#allocation2 + $0x5]]
    %v29 = vstv %s28
    %v30 = vadd.f32 %v27, %v29
    %v31 = vmax.f32 %v30, 0.0
    %s32 = sld [smem:[#allocation2 + $0x1]]
    %v33 = vstv %s32
    %v34 = vmul.f32 %v24, %v33
    %s35 = sld [smem:[#allocation2 + $0x6]]
    %v36 = vstv %s35
    %v37 = vadd.f32 %v34, %v36
    %v38 = vmax.f32 %v37, 0.0
    %s39 = sld [smem:[#allocation2 + $0x2]]
    %v40 = vstv %s39
    %v41 = vmul.f32 %v24, %v40
    %s42 = sld [smem:[#allocation2 + $0x7]]
    %v43 = vstv %s42
    %v44 = vadd.f32 %v41, %v43
    %v45 = vmax.f32 %v44, 0.0
    %s46 = sld [smem:[#allocation2 + $0x3]]
    %v47 = vstv %s46
    %v48 = vmul.f32 %v24, %v47
    %s49 = sld [smem:[#allocation2 + $0x8]]
    %v50 = vstv %s49
    %v51 = vadd.f32 %v48, %v50
    %v52 = vmax.f32 %v51, 0.0
    %s53 = sld [smem:[#allocation2 + $0x4]]
    %v54 = vstv %s53
    %v55 = vmul.f32 %v24, %v54
    %s56 = sld [smem:[#allocation2 + $0x9]]
    %v57 = vstv %s56
    %v58 = vadd.f32 %v55, %v57
    %v59 = vmax.f32 %v58, 0.0
    %s60 = sld [smem:[#allocation2 + $0xa]]
    %v61 = vstv %s60
    %v62 = vmul.f32 %v31, %v61
    %s63 = sld [smem:[#allocation2 + $0x23]]
    %v64 = vstv %s63
    %v65 = vadd.f32 %v62, %v64
    %s66 = sld [smem:[#allocation2 + $0xf]]
    %v67 = vstv %s66
    %v68 = vmul.f32 %v38, %v67
    %v69 = vadd.f32 %v65, %v68
    %s70 = sld [smem:[#allocation2 + $0x14]]
    %v71 = vstv %s70
    %v72 = vmul.f32 %v45, %v71
    %v73 = vadd.f32 %v69, %v72
    %s74 = sld [smem:[#allocation2 + $0x19]]
    %v75 = vstv %s74
    %v76 = vmul.f32 %v52, %v75
    %v77 = vadd.f32 %v73, %v76
    %s78 = sld [smem:[#allocation2 + $0x1e]]
    %v79 = vstv %s78
    %v80 = vmul.f32 %v59, %v79
    %v81 = vadd.f32 %v77, %v80
    %v82 = vmax.f32 %v81, 0.0
    %s83 = sld [smem:[#allocation2 + $0xb]]
    %v84 = vstv %s83
    %v85 = vmul.f32 %v31, %v84
    %s86 = sld [smem:[#allocation2 + $0x24]]
    %v87 = vstv %s86
    %v88 = vadd.f32 %v85, %v87
    %s89 = sld [smem:[#allocation2 + $0x10]]
    %v90 = vstv %s89
    %v91 = vmul.f32 %v38, %v90
    %v92 = vadd.f32 %v88, %v91
    %s93 = sld [smem:[#allocation2 + $0x15]]
    %v94 = vstv %s93
    %v95 = vmul.f32 %v45, %v94
    %v96 = vadd.f32 %v92, %v95
    %s97 = sld [smem:[#allocation2 + $0x1a]]
    %v98 = vstv %s97
    %v99 = vmul.f32 %v52, %v98
    %v100 = vadd.f32 %v96, %v99
    %s101 = sld [smem:[#allocation2 + $0x1f]]
    %v102 = vstv %s101
    %v103 = vmul.f32 %v59, %v102
    %v104 = vadd.f32 %v100, %v103
    %v105 = vmax.f32 %v104, 0.0
    %s106 = sld [smem:[#allocation2 + $0xc]]
    %v107 = vstv %s106
    %v108 = vmul.f32 %v31, %v107
    %s109 = sld [smem:[#allocation2 + $0x25]]
    %v110 = vstv %s109
    %v111 = vadd.f32 %v108, %v110
    %s112 = sld [smem:[#allocation2 + $0x11]]
    %v113 = vstv %s112
    %v114 = vmul.f32 %v38, %v113
    %v115 = vadd.f32 %v111, %v114
    %s116 = sld [smem:[#allocation2 + $0x16]]
    %v117 = vstv %s116
    %v118 = vmul.f32 %v45, %v117
    %v119 = vadd.f32 %v115, %v118
    %s120 = sld [smem:[#allocation2 + $0x1b]]
    %v121 = vstv %s120
    %v122 = vmul.f32 %v52, %v121
    %v123 = vadd.f32 %v119, %v122
    %s124 = sld [smem:[#allocation2 + $0x20]]
    %v125 = vstv %s124
    %v126 = vmul.f32 %v59, %v125
    %v127 = vadd.f32 %v123, %v126
    %v128 = vmax.f32 %v127, 0.0
    %s129 = sld [smem:[#allocation2 + $0xd]]
    %v130 = vstv %s129
    %v131 = vmul.f32 %v31, %v130
    %s132 = sld [smem:[#allocation2 + $0x26]]
    %v133 = vstv %s132
    %v134 = vadd.f32 %v131, %v133
    %s135 = sld [smem:[#allocation2 + $0x12]]
    %v136 = vstv %s135
    %v137 = vmul.f32 %v38, %v136
    %v138 = vadd.f32 %v134, %v137
    %s139 = sld [smem:[#allocation2 + $0x17]]
    %v140 = vstv %s139
    %v141 = vmul.f32 %v45, %v140
    %v142 = vadd.f32 %v138, %v141
    %s143 = sld [smem:[#allocation2 + $0x1c]]
    %v144 = vstv %s143
    %v145 = vmul.f32 %v52, %v144
    %v146 = vadd.f32 %v142, %v145
    %s147 = sld [smem:[#allocation2 + $0x21]]
    %v148 = vstv %s147
    %v149 = vmul.f32 %v59, %v148
    %v150 = vadd.f32 %v146, %v149
    %v151 = vmax.f32 %v150, 0.0
    %s152 = sld [smem:[#allocation2 + $0xe]]
    %v153 = vstv %s152
    %v154 = vmul.f32 %v31, %v153
    %s155 = sld [smem:[#allocation2 + $0x27]]
    %v156 = vstv %s155
    %v157 = vadd.f32 %v154, %v156
    %s158 = sld [smem:[#allocation2 + $0x13]]
    %v159 = vstv %s158
    %v160 = vmul.f32 %v38, %v159
    %v161 = vadd.f32 %v157, %v160
    %s162 = sld [smem:[#allocation2 + $0x18]]
    %v163 = vstv %s162
    %v164 = vmul.f32 %v45, %v163
    %v165 = vadd.f32 %v161, %v164
    %s166 = sld [smem:[#allocation2 + $0x1d]]
    %v167 = vstv %s166
    %v168 = vmul.f32 %v52, %v167
    %v169 = vadd.f32 %v165, %v168
    %s170 = sld [smem:[#allocation2 + $0x22]]
    %v171 = vstv %s170
    %v172 = vmul.f32 %v59, %v171
    %v173 = vadd.f32 %v169, %v172
    %v174 = vmax.f32 %v173, 0.0
    %s175 = sld [smem:[#allocation2 + $0x28]]
    %v176 = vstv %s175
    %v177 = vmul.f32 %v82, %v176
    %s178 = sld [smem:[#allocation2 + $0x2d]]
    %v179 = vstv %s178
    %v180 = vadd.f32 %v177, %v179
    %s181 = sld [smem:[#allocation2 + $0x29]]
    %v182 = vstv %s181
    %v183 = vmul.f32 %v105, %v182
    %v184 = vadd.f32 %v180, %v183
    %s185 = sld [smem:[#allocation2 + $0x2a]]
    %v186 = vstv %s185
    %v187 = vmul.f32 %v128, %v186
    %v188 = vadd.f32 %v184, %v187
    %s189 = sld [smem:[#allocation2 + $0x2b]]
    %v190 = vstv %s189
    %v191 = vmul.f32 %v151, %v190
    %v192 = vadd.f32 %v188, %v191
    %s193 = sld [smem:[#allocation2 + $0x2c]]
    %v194 = vstv %s193
    %v195 = vmul.f32 %v174, %v194
    %v196 = vadd.f32 %v192, %v195
    %197 = vst [vmem:[%s2] sm:$0xff] %v196
    // Predicated region
    $region14: #{lajimodel_forward.1} parent=1 // pred_check
      _
    $region15: #{lajimodel_forward.1} parent=1 // pred_check_branch
      %199 = sbr.rel (0) target = $region17
    $region16: #{lajimodel_forward.1} parent=1 // pred_region
      _
    $region17: #{lajimodel_forward.1} parent=1 // pred_fallthru
      _
    // Predicated region
    $region18: #{lajimodel_forward.1} parent=1 // pred_check
      _
    $region19: #{lajimodel_forward.1} parent=1 // pred_check_branch
      %201 = sbr.rel (0) target = $region21
    $region20: #{lajimodel_forward.1} parent=1 // pred_region
      _
    $region21: #{lajimodel_forward.1} parent=1 // pred_fallthru
      _
    %202 = vsyncpa [#allocation3], 1

</llo_original>
